<compile_context>
chip_gen: v7x
topology: tpu7x:2x2x1
jax: 0.10.0
libtpu: 0.0.40
codegen_flags: <defaults>
</compile_context>

<pallas_src>
import functools

import jax
import jax.numpy as jnp
from jax.experimental import pallas as pl
from jax.experimental.pallas import tpu as pltpu

EPS = 1e-5  # nn.BatchNorm2d default eps


def _round_up(n, m):
    return ((n + m - 1) // m) * m


def _pick_tile(b):
    """Batch tile (lane/sublane friendly, multiple of 128 rows)."""
    bp = _round_up(b, 128)
    if bp <= 128:
        return bp, bp, 1
    # >= 2 grid steps when the batch allows it (keeps both v7x TensorCores
    # busy on the "parallel" axis) and cap the tile at 1024 rows.
    tb = min(1024, _round_up(bp // 2, 128))
    bp = _round_up(bp, tb)
    return bp, tb, bp // tb


def _toeplitz_conv_matrix(w, in_hw, out_hw, pad):
    """A[k_in, m_out] such that (x_flat @ A) == conv2d(x, w) flattened.

    x_flat index  k = ch*inH*inW + i*inW + j       (channel, row, col)
    output index  m = o*outH*outW + r*outW + c
    Built once host-side from the (tiny) conv weights; zero-padding taps simply
    contribute nothing (no column), so the data path needs no spatial padding.
    """
    o_dim, c_dim, kh, kw = w.shape
    in_h, in_w = in_hw
    out_h, out_w = out_hw
    o, r, c, ch, di, dj = jnp.meshgrid(
        jnp.arange(o_dim), jnp.arange(out_h), jnp.arange(out_w),
        jnp.arange(c_dim), jnp.arange(kh), jnp.arange(kw), indexing="ij")
    ii = r + di - pad
    jj = c + dj - pad
    valid = (ii >= 0) & (ii < in_h) & (jj >= 0) & (jj < in_w)
    k = ch * (in_h * in_w) + jnp.clip(ii, 0, in_h - 1) * in_w \
        + jnp.clip(jj, 0, in_w - 1)
    m = o * (out_h * out_w) + r * out_w + c
    vals = jnp.where(valid, w[o, ch, di, dj], 0.0)
    a = jnp.zeros((c_dim * in_h * in_w, o_dim * out_h * out_w), w.dtype)
    return a.at[k.ravel(), m.ravel()].add(vals.ravel())


# ----------------------------------------------------------------------------
# Fused kernel: conv1+BN1+ReLU -> conv2+BN2+ReLU -> AvgPool+Linear(16,1)
# expressed as a batched 3-layer MLP (batch on sublanes, features on lanes).
# ----------------------------------------------------------------------------
def _fused_mlp_kernel(x_ref, a1_ref, a2_ref, c_ref, o_ref, *, m1, m2):
    # x_ref : (1, TB, K0) bf16   raw input tile, rows = examples, cols = (ch,i,j)
    # a1_ref: (K0, m1)    bf16   conv1 Toeplitz matrix (BN1 scale folded)
    # a2_ref: (m1, m2)    bf16   conv2 Toeplitz matrix (BN2 scale folded)
    # c_ref : (8, 256)    f32    row0: bias1, row1: bias2, row2: 0.25*fc_w
    #                            (pool folded), row3[0]: fc bias
    # o_ref : (TB, 1)     f32
    xb = x_ref[0]                                                    # (TB, K0)

    # conv1 + BN1 + ReLU (bf16 MXU, f32 accumulation)
    h1 = jnp.dot(xb, a1_ref[...], preferred_element_type=jnp.float32)
    h1 = jnp.maximum(h1 + c_ref[0:1, 0:m1], 0.0)                     # (TB, m1)

    # conv2 + BN2 + ReLU
    h2 = jnp.dot(h1.astype(jnp.bfloat16), a2_ref[...],
                 preferred_element_type=jnp.float32)
    h2 = jnp.maximum(h2 + c_ref[1:2, 0:m2], 0.0)                     # (TB, m2)

    # AvgPool(2x2) + Linear(16 -> 1): fc row pre-scaled by 0.25 and expanded
    # over the 4 pooled positions -> one lane reduction.
    out = jnp.sum(h2 * c_ref[2:3, 0:m2], axis=1, keepdims=True)      # (TB, 1)
    o_ref[...] = out + c_ref[3:4, 0:1]


# ----------------------------------------------------------------------------
# Full forward (matches MyNet.forward, eval-mode BN)
# ----------------------------------------------------------------------------
def mynet_forward(x, params):
    x = x.astype(jnp.float32)
    B, C, H, W = x.shape
    assert (H, W) == (5, 5), "Linear(16, 1) implies a 5x5 spatial input"

    K0 = C * 25          # flattened input features
    M1 = 6 * 25          # conv1 output features (6 x 5 x 5)
    M2 = 16 * 4          # conv2 output features (16 x 2 x 2)

    Bp, TB, nb = _pick_tile(B)

    # ---- fold conv biases + eval-mode BN into Toeplitz weight matrices ------
    s1 = params["bn1_g"] / jnp.sqrt(params["bn1_rv"] + EPS)
    w1s = params["conv1_w"] * s1[:, None, None, None]                # (6,C,3,3)
    t1 = s1 * params["conv1_b"] + params["bn1_b"] - s1 * params["bn1_rm"]
    a1 = _toeplitz_conv_matrix(w1s, (5, 5), (5, 5), pad=1)           # (K0, 150)
    t1f = jnp.repeat(t1, 25)                                         # (150,)

    s2 = params["bn2_g"] / jnp.sqrt(params["bn2_rv"] + EPS)
    w2s = params["conv2_w"] * s2[:, None, None, None]                # (16,6,4,4)
    t2 = s2 * params["conv2_b"] + params["bn2_b"] - s2 * params["bn2_rm"]
    a2 = _toeplitz_conv_matrix(w2s, (5, 5), (2, 2), pad=0)           # (150, 64)
    t2f = jnp.repeat(t2, 4)                                          # (64,)

    a3 = 0.25 * jnp.repeat(params["fc_w"].reshape(16), 4)            # (64,) pool folded

    # coalesced small-constant operand (single aligned DMA)
    cpack = jnp.zeros((8, 256), jnp.float32)
    cpack = cpack.at[0, :M1].set(t1f)
    cpack = cpack.at[1, :M2].set(t2f)
    cpack = cpack.at[2, :M2].set(a3)
    cpack = cpack.at[3, 0].set(params["fc_b"][0])

    a1 = a1.astype(jnp.bfloat16)
    a2 = a2.astype(jnp.bfloat16)

    # ---- input glue: just flatten + cast + pad (no im2col, no transpose) ----
    xt = x.reshape(B, K0).astype(jnp.bfloat16)
    xt = jnp.pad(xt, ((0, Bp - B), (0, 0))).reshape(nb, TB, K0)

    flops = 2 * Bp * (K0 * M1 + M1 * M2 + M2)
    bytes_accessed = (xt.size * 2 + a1.size * 2 + a2.size * 2
                      + cpack.size * 4 + Bp * 4)

    out = pl.pallas_call(
        functools.partial(_fused_mlp_kernel, m1=M1, m2=M2),
        out_shape=jax.ShapeDtypeStruct((Bp, 1), jnp.float32),
        grid=(nb,),
        in_specs=[
            pl.BlockSpec((1, TB, K0), lambda t: (t, 0, 0)),   # raw input tile
            pl.BlockSpec((K0, M1), lambda t: (0, 0)),         # A1
            pl.BlockSpec((M1, M2), lambda t: (0, 0)),         # A2
            pl.BlockSpec((8, 256), lambda t: (0, 0)),         # packed constants
        ],
        out_specs=pl.BlockSpec((TB, 1), lambda t: (t, 0)),
        compiler_params=pltpu.CompilerParams(
            dimension_semantics=("parallel",)),
        cost_estimate=pl.CostEstimate(flops=flops, transcendentals=0,
                                      bytes_accessed=bytes_accessed),
    )(xt, a1, a2, cpack)

    return out[:B].reshape(B, 1)


# ----------------------------------------------------------------------------
# Pure-JAX reference (for correctness check)
# ----------------------------------------------------------------------------
def reference_forward(x, params):
    dn = ("NCHW", "OIHW", "NCHW")

    def bn(y, g, b, rm, rv):
        return ((y - rm[None, :, None, None])
                / jnp.sqrt(rv[None, :, None, None] + EPS)
                * g[None, :, None, None] + b[None, :, None, None])

    y = jax.lax.conv_general_dilated(x, params["conv1_w"], (1, 1),
                                     ((1, 1), (1, 1)), dimension_numbers=dn)
    y = y + params["conv1_b"][None, :, None, None]
    y = jnp.maximum(bn(y, params["bn1_g"], params["bn1_b"],
                       params["bn1_rm"], params["bn1_rv"]), 0.0)
    z = jax.lax.conv_general_dilated(y, params["conv2_w"], (1, 1),
                                     ((0, 0), (0, 0)), dimension_numbers=dn)
    z = z + params["conv2_b"][None, :, None, None]
    z = jnp.maximum(bn(z, params["bn2_g"], params["bn2_b"],
                       params["bn2_rm"], params["bn2_rv"]), 0.0)
    pooled = jnp.mean(z, axis=(2, 3))                 # 2x2 avgpool -> (B, 16)
    return pooled @ params["fc_w"].T + params["fc_b"][None, :]


# ----------------------------------------------------------------------------
if __name__ == "__main__":
    # Linear(16, 1) forces the conv stack to end at 16x1x1, so spatial = 5x5.
    B, NC, H, W = 2, 4, 5, 5
    ks = jax.random.split(jax.random.PRNGKey(0), 16)

    params = {
        "conv1_w": 0.1 * jax.random.normal(ks[0], (6, NC, 3, 3), jnp.float32),
        "conv1_b": 0.1 * jax.random.normal(ks[1], (6,), jnp.float32),
        "bn1_g": 1.0 + 0.1 * jax.random.normal(ks[2], (6,), jnp.float32),
        "bn1_b": 0.1 * jax.random.normal(ks[3], (6,), jnp.float32),
        "bn1_rm": 0.1 * jax.random.normal(ks[4], (6,), jnp.float32),
        "bn1_rv": jnp.abs(jax.random.normal(ks[5], (6,), jnp.float32)) + 0.5,
        "conv2_w": 0.1 * jax.random.normal(ks[6], (16, 6, 4, 4), jnp.float32),
        "conv2_b": 0.1 * jax.random.normal(ks[7], (16,), jnp.float32),
        "bn2_g": 1.0 + 0.1 * jax.random.normal(ks[8], (16,), jnp.float32),
        "bn2_b": 0.1 * jax.random.normal(ks[9], (16,), jnp.float32),
        "bn2_rm": 0.1 * jax.random.normal(ks[10], (16,), jnp.float32),
        "bn2_rv": jnp.abs(jax.random.normal(ks[11], (16,), jnp.float32)) + 0.5,
        "fc_w": 0.1 * jax.random.normal(ks[12], (1, 16), jnp.float32),
        "fc_b": 0.1 * jax.random.normal(ks[13], (1,), jnp.float32),
    }
    x = jax.random.normal(ks[15], (B, NC, H, W), jnp.float32)

    out = jax.block_until_ready(mynet_forward(x, params))
    assert out.shape == (B, 1), out.shape

    ref = reference_forward(x, params)
    # bf16 streaming / bf16 MXU operands (f32 accumulation) -> looser tolerance.
    if not jnp.allclose(out, ref, atol=2e-2, rtol=2e-2):
        raise AssertionError(f"mismatch: pallas={out} ref={ref}")

    print("KERNEL_OK")
</pallas_src>

<mosaic_0001>
module attributes {stable_mosaic.version = 11 : i64} {
  func.func @_fused_mlp_kernel(%arg0: i32, %arg1: memref<1x128x100xbf16, #tpu.memory_space<vmem>>, %arg2: memref<100x150xbf16, #tpu.memory_space<vmem>>, %arg3: memref<150x64xbf16, #tpu.memory_space<vmem>>, %arg4: memref<8x256xf32, #tpu.memory_space<vmem>>, %arg5: memref<128x1xf32, #tpu.memory_space<vmem>>) attributes {dimension_semantics = [#tpu.dimension_semantics<parallel>], iteration_bounds = array<i64: 1>, scalar_prefetch = 0 : i64, scratch_operands = 0 : i64, tpu.core_type = #tpu.core_type<tc>, window_params = [{transform_indices = @transform_0, window_bounds = array<i64: 1, 128, 100>}, {pipeline_mode = #tpu.pipeline_mode<synchronous>, transform_indices = @transform_1, window_bounds = array<i64: 100, 150>}, {pipeline_mode = #tpu.pipeline_mode<synchronous>, transform_indices = @transform_2, window_bounds = array<i64: 150, 64>}, {pipeline_mode = #tpu.pipeline_mode<synchronous>, transform_indices = @transform_3, window_bounds = array<i64: 8, 256>}, {transform_indices = @transform_4, window_bounds = array<i64: 128, 1>}]} {
    %c0 = arith.constant 0 : index
    %c0_0 = arith.constant 0 : index
    %c0_1 = arith.constant 0 : index
    %0 = vector.load %arg1[%c0, %c0_0, %c0_1] : memref<1x128x100xbf16, #tpu.memory_space<vmem>>, vector<1x128x100xbf16>
    %1 = vector.shape_cast %0 : vector<1x128x100xbf16> to vector<128x100xbf16>
    %c0_2 = arith.constant 0 : index
    %c0_3 = arith.constant 0 : index
    %2 = vector.load %arg2[%c0_2, %c0_3] : memref<100x150xbf16, #tpu.memory_space<vmem>>, vector<100x150xbf16>
    %cst = arith.constant dense<0.000000e+00> : vector<128x150xf32>
    %3 = tpu.matmul %1, %2, %cst {dimension_numbers = #tpu.dot_dimension_numbers<[1], [0], [0], [1], [0, 0, 1, 1], [], []>} : vector<128x100xbf16>, vector<100x150xbf16>, vector<128x150xf32> -> vector<128x150xf32>
    %c0_4 = arith.constant 0 : index
    %c0_5 = arith.constant 0 : index
    %4 = vector.load %arg4[%c0_4, %c0_5] : memref<8x256xf32, #tpu.memory_space<vmem>>, vector<1x150xf32>
    %5 = vector.broadcast %4 : vector<1x150xf32> to vector<128x150xf32>
    %6 = arith.addf %3, %5 : vector<128x150xf32>
    %cst_6 = arith.constant 0.000000e+00 : f32
    %7 = vector.broadcast %cst_6 : f32 to vector<128x150xf32>
    %8 = arith.maximumf %6, %7 : vector<128x150xf32>
    %9 = arith.truncf %8 : vector<128x150xf32> to vector<128x150xbf16>
    %c0_7 = arith.constant 0 : index
    %c0_8 = arith.constant 0 : index
    %10 = vector.load %arg3[%c0_7, %c0_8] : memref<150x64xbf16, #tpu.memory_space<vmem>>, vector<150x64xbf16>
    %cst_9 = arith.constant dense<0.000000e+00> : vector<128x64xf32>
    %11 = tpu.matmul %9, %10, %cst_9 {dimension_numbers = #tpu.dot_dimension_numbers<[1], [0], [0], [1], [0, 0, 1, 1], [], []>} : vector<128x150xbf16>, vector<150x64xbf16>, vector<128x64xf32> -> vector<128x64xf32>
    %c1 = arith.constant 1 : index
    %c0_10 = arith.constant 0 : index
    %12 = vector.load %arg4[%c1, %c0_10] : memref<8x256xf32, #tpu.memory_space<vmem>>, vector<1x64xf32>
    %13 = vector.broadcast %12 : vector<1x64xf32> to vector<128x64xf32>
    %14 = arith.addf %11, %13 : vector<128x64xf32>
    %cst_11 = arith.constant 0.000000e+00 : f32
    %15 = vector.broadcast %cst_11 : f32 to vector<128x64xf32>
    %16 = arith.maximumf %14, %15 : vector<128x64xf32>
    %c2 = arith.constant 2 : index
    %c0_12 = arith.constant 0 : index
    %17 = vector.load %arg4[%c2, %c0_12] : memref<8x256xf32, #tpu.memory_space<vmem>>, vector<1x64xf32>
    %18 = vector.broadcast %17 : vector<1x64xf32> to vector<128x64xf32>
    %19 = arith.mulf %16, %18 : vector<128x64xf32>
    %cst_13 = arith.constant dense<0.000000e+00> : vector<128xf32>
    %20 = vector.multi_reduction <add>, %19, %cst_13 [1] : vector<128x64xf32> to vector<128xf32>
    %21 = vector.shape_cast %20 : vector<128xf32> to vector<128x1xf32>
    %c3 = arith.constant 3 : index
    %c0_14 = arith.constant 0 : index
    %22 = vector.load %arg4[%c3, %c0_14] : memref<8x256xf32, #tpu.memory_space<vmem>>, vector<1x1xf32>
    %23 = vector.broadcast %22 : vector<1x1xf32> to vector<128x1xf32>
    %24 = arith.addf %21, %23 : vector<128x1xf32>
    %c0_15 = arith.constant 0 : index
    %c0_16 = arith.constant 0 : index
    %25 = vector.load %arg5[%c0_15, %c0_16] : memref<128x1xf32, #tpu.memory_space<vmem>>, vector<128x1xf32>
    tpu.vector_store %arg5[%c0_15, %c0_16], %24 {strides = array<i32>} : memref<128x1xf32, #tpu.memory_space<vmem>>, vector<128x1xf32>,
    return
  }
  func.func @transform_0(%arg0: i32) -> (i32, i32, i32) {
    %c0_i32 = arith.constant 0 : i32
    %c0_i32_0 = arith.constant 0 : i32
    %c0_i32_1 = arith.constant 0 : i32
    return %arg0, %c0_i32, %c0_i32_0 : i32, i32, i32
  }
  func.func @transform_1(%arg0: i32) -> (i32, i32) {
    %c0_i32 = arith.constant 0 : i32
    %c0_i32_0 = arith.constant 0 : i32
    %c0_i32_1 = arith.constant 0 : i32
    return %c0_i32, %c0_i32_0 : i32, i32
  }
  func.func @transform_2(%arg0: i32) -> (i32, i32) {
    %c0_i32 = arith.constant 0 : i32
    %c0_i32_0 = arith.constant 0 : i32
    %c0_i32_1 = arith.constant 0 : i32
    return %c0_i32, %c0_i32_0 : i32, i32
  }
  func.func @transform_3(%arg0: i32) -> (i32, i32) {
    %c0_i32 = arith.constant 0 : i32
    %c0_i32_0 = arith.constant 0 : i32
    %c0_i32_1 = arith.constant 0 : i32
    return %c0_i32, %c0_i32_0 : i32, i32
  }
  func.func @transform_4(%arg0: i32) -> (i32, i32) {
    %c0_i32 = arith.constant 0 : i32
    %c0_i32_0 = arith.constant 0 : i32
    return %arg0, %c0_i32 : i32, i32
  }
}

</mosaic_0001>

<llo_original>
// kernel: tpu_custom_call.1
$region0: #{tpu_custom_call.1}
  #allocation0 [shape = 'u32[]', space=smem, size = 0x4, offset = 0x4, fixed_abs, tag = 'smem constant byte address 0x4 - core index']
  #allocation1 [shape = 'u32[144,128]{1,0:T(1,128)}', space=vmem, size = 0x12000, scoped, tag = 'internal scratch']
  %s0 = inlined_call_operand.vmem [shape: bf16[1,128,100], index: 0, kind: input, shape index: {}]
  %s1 = inlined_call_operand.vmem [shape: bf16[100,150], index: 1, kind: input, shape index: {}]
  %s2 = inlined_call_operand.vmem [shape: bf16[150,64], index: 2, kind: input, shape index: {}]
  %s3 = inlined_call_operand.vmem [shape: f32[8,256], index: 3, kind: input, shape index: {}]
  %s4 = inlined_call_operand.vmem [shape: f32[128,1], index: 4, kind: output, shape index: {}]
  %s5 = sld [smem:[#allocation0]]
  $region26: #{tpu_custom_call.1} parent=0
    _
  %s7 = ssub.s32 1, %s5
  %s8 = scalar_select 0, %s7, %s5
  // Predicated region
  $region2: #{tpu_custom_call.1} parent=0 // pred_check
    _
  $region3: #{tpu_custom_call.1} parent=0 // pred_check_branch
    %10 = sbr.rel (0) target = $region5
  $region4: #{tpu_custom_call.1} parent=0 // pred_region
    _
  $region5: #{tpu_custom_call.1} parent=0 // pred_fallthru
    _
  // Predicated region
  $region6: #{tpu_custom_call.1} parent=0 // pred_check
    _
  $region7: #{tpu_custom_call.1} parent=0 // pred_check_branch
    %12 = sbr.rel (0) target = $region9
  $region8: #{tpu_custom_call.1} parent=0 // pred_region
    _
  $region9: #{tpu_custom_call.1} parent=0 // pred_fallthru
    _
  // Predicated region
  $region10: #{tpu_custom_call.1} parent=0 // pred_check
    _
  $region11: #{tpu_custom_call.1} parent=0 // pred_check_branch
    %14 = sbr.rel (0) target = $region13
  $region12: #{tpu_custom_call.1} parent=0 // pred_region
    _
  $region13: #{tpu_custom_call.1} parent=0 // pred_fallthru
    _
  // Predicated region
  $region14: #{tpu_custom_call.1} parent=0 // pred_check
    _
  $region15: #{tpu_custom_call.1} parent=0 // pred_check_branch
    %16 = sbr.rel (0) target = $region17
  $region16: #{tpu_custom_call.1} parent=0 // pred_region
    _
  $region17: #{tpu_custom_call.1} parent=0 // pred_fallthru
    _
  %v18 = vld [vmem:[%s0] sm:$0xf]
  %v19 = vld [vmem:[%s0 + $0x4] sm:$0xf]
  %v20 = vld [vmem:[%s0 + $0x8] sm:$0xf]
  %v21 = vld [vmem:[%s0 + $0xc] sm:$0xf]
  %v22 = vld [vmem:[%s0 + $0x10] sm:$0xf]
  %v23 = vld [vmem:[%s0 + $0x14] sm:$0xf]
  %v24 = vld [vmem:[%s0 + $0x18] sm:$0xf]
  %v25 = vld [vmem:[%s0 + $0x1c] sm:$0xf]
  %v26 = vld [vmem:[%s0 + $0x20] sm:$0xf]
  %v27 = vld [vmem:[%s0 + $0x24] sm:$0xf]
  %v28 = vld [vmem:[%s0 + $0x28] sm:$0xf]
  %v29 = vld [vmem:[%s0 + $0x2c] sm:$0xf]
  %v30 = vld [vmem:[%s0 + $0x30] sm:$0xf]
  %v31 = vld [vmem:[%s0 + $0x34] sm:$0xf]
  %v32 = vld [vmem:[%s0 + $0x38] sm:$0xf]
  %v33 = vld [vmem:[%s0 + $0x3c] sm:$0xf]
  %v34 = vld [vmem:[%s1] sm:$0xff]
  %v35 = vld [vmem:[%s1 + $0x8] sm:$0xff]
  %v36 = vld [vmem:[%s1 + $0x10] sm:$0xff]
  %v37 = vld [vmem:[%s1 + $0x18] sm:$0xff]
  %v38 = vld [vmem:[%s1 + $0x20] sm:$0xff]
  %v39 = vld [vmem:[%s1 + $0x28] sm:$0xff]
  %v40 = vld [vmem:[%s1 + $0x30] sm:$0xff]
  %v41 = vld [vmem:[%s1 + $0x38] sm:$0xff]
  %v42 = vld [vmem:[%s1 + $0x40] sm:$0xff]
  %v43 = vld [vmem:[%s1 + $0x48] sm:$0xff]
  %v44 = vld [vmem:[%s1 + $0x50] sm:$0xff]
  %v45 = vld [vmem:[%s1 + $0x58] sm:$0xff]
  %v46 = vld [vmem:[%s1 + $0x60] sm:$0x33]
  %v47 = vld [vmem:[%s3] ss:$8 sm:$0x3]
  %v49 = vlaneseq
  %v50 = vshrl.u32 %v49, 7
  %v51 = vsub.s32 0, %v50
  %v52 = vrot.slane %v47, %v51
  %v53 = vlaneseq
  %v54 = vshrl.u32 %v53, 7
  %v55 = vsub.s32 1, %v54
  %v56 = vrot.slane %v47, %v55
  %v75 = vunpack.c.l.b16 %v18
  %v76 = vunpack.c.l.b16 %v19
  %v77 = vunpack.c.l.b16 %v20
  %v78 = vunpack.c.l.b16 %v21
  %v79 = vunpack.c.l.b16 %v22
  %v80 = vunpack.c.l.b16 %v23
  %v81 = vunpack.c.l.b16 %v24
  %v82 = vunpack.c.l.b16 %v25
  %v83 = vunpack.c.l.b16 %v26
  %v84 = vunpack.c.l.b16 %v27
  %v85 = vunpack.c.l.b16 %v28
  %v86 = vunpack.c.l.b16 %v29
  %v87 = vunpack.c.l.b16 %v30
  %v88 = vunpack.c.l.b16 %v31
  %v89 = vunpack.c.l.b16 %v32
  %v90 = vunpack.c.l.b16 %v33
  %v91 = vpack.c.b16 %v76, %v75
  %v92 = vpack.c.b16 %v78, %v77
  %v93 = vpack.c.b16 %v80, %v79
  %v94 = vpack.c.b16 %v82, %v81
  %v95 = vpack.c.b16 %v84, %v83
  %v96 = vpack.c.b16 %v86, %v85
  %v97 = vpack.c.b16 %v88, %v87
  %v98 = vpack.c.b16 %v90, %v89
  %v112 = vunpack.c.l.b16 %v34
  %v113 = vunpack.c.h.b16 %v34
  %v114 = vunpack.c.l.b16 %v35
  %v115 = vunpack.c.h.b16 %v35
  %v116 = vunpack.c.l.b16 %v36
  %v117 = vunpack.c.h.b16 %v36
  %v118 = vunpack.c.l.b16 %v37
  %v119 = vunpack.c.h.b16 %v37
  %v120 = vunpack.c.l.b16 %v38
  %v121 = vunpack.c.h.b16 %v38
  %v122 = vunpack.c.l.b16 %v39
  %v123 = vunpack.c.h.b16 %v39
  %v124 = vunpack.c.l.b16 %v40
  %v125 = vunpack.c.h.b16 %v40
  %v126 = vunpack.c.l.b16 %v41
  %v127 = vunpack.c.h.b16 %v41
  %v128 = vunpack.c.l.b16 %v42
  %v129 = vunpack.c.h.b16 %v42
  %v130 = vunpack.c.l.b16 %v43
  %v131 = vunpack.c.h.b16 %v43
  %v132 = vunpack.c.l.b16 %v44
  %v133 = vunpack.c.h.b16 %v44
  %v134 = vunpack.c.l.b16 %v45
  %v135 = vunpack.c.h.b16 %v45
  %v136 = vunpack.c.l.b16 %v46
  %v137 = vunpack.c.h.b16 %v46
  %v138 = vpack.c.b16 %v114, %v112
  %v139 = vpack.c.b16 %v115, %v113
  %v140 = vpack.c.b16 %v118, %v116
  %v141 = vpack.c.b16 %v119, %v117
  %v142 = vpack.c.b16 %v122, %v120
  %v143 = vpack.c.b16 %v123, %v121
  %v144 = vpack.c.b16 %v126, %v124
  %v145 = vpack.c.b16 %v127, %v125
  %v146 = vpack.c.b16 %v130, %v128
  %v147 = vpack.c.b16 %v131, %v129
  %v148 = vpack.c.b16 %v134, %v132
  %v149 = vpack.c.b16 %v135, %v133
  %v150 = vpack.c.b16 %v136, %v136
  %v151 = vpack.c.b16 %v137, %v137
  %vm164 = vcmask 818176
  %v166 = vsel %vm164, %v91, 0
  %v169 = vsel %vm164, %v92, 0
  %v172 = vsel %vm164, %v93, 0
  %v175 = vsel %vm164, %v94, 0
  %v178 = vsel %vm164, %v95, 0
  %v181 = vsel %vm164, %v96, 0
  %v184 = vsel %vm164, %v97, 0
  %v187 = vsel %vm164, %v98, 0
  %vm189 = vcmask 1041408
  %v191 = vsel %vm189, %v150, 0
  %v194 = vsel %vm189, %v151, 0
  %196 = vmatprep.subr.bf16.mxu0 %v139
  %197 = vmatpush1.bf16.msra.mxu0 %v138
  %198 = vmatprep.subr.bf16.mxu0 %v141
  %199 = vmatpush1.bf16.msra.mxu0 %v140
  %200 = vmatprep.subr.bf16.mxu0 %v143
  %201 = vmatpush1.bf16.msra.mxu0 %v142
  %202 = vmatprep.subr.bf16.mxu0 %v145
  %203 = vmatpush1.bf16.msra.mxu0 %v144
  %204 = vmatprep.subr.bf16.mxu0 %v147
  %205 = vmatpush1.bf16.msra.mxu0 %v146
  %206 = vmatprep.subr.bf16.mxu0 %v149
  %207 = vmatpush1.bf16.msra.mxu0 %v148
  %208 = vmatprep.subr.bf16.mxu0 %v194
  %209 = vmatpush1.bf16.msra.mxu0 %v191
  %210 = vmatprep.subr.bf16.mxu0 0
  %211 = vmatpush1.bf16.msra.mxu0 0
  %212 = vmatprep.subr.bf16.mxu0 0
  %213 = vmatpush1.bf16.msra.mxu0 0
  %214 = vmatprep.subr.bf16.mxu0 0
  %215 = vmatpush1.bf16.msra.mxu0 0
  %216 = vmatprep.subr.bf16.mxu0 0
  %217 = vmatpush1.bf16.msra.mxu0 0
  %218 = vmatprep.subr.bf16.mxu0 0
  %219 = vmatpush1.bf16.msra.mxu0 0
  %220 = vmatprep.subr.bf16.mxu0 0
  %221 = vmatpush1.bf16.msra.mxu0 0
  %222 = vmatprep.subr.bf16.mxu0 0
  %223 = vmatpush1.bf16.msra.mxu0 0
  %224 = vmatprep.subr.bf16.mxu0 0
  %225 = vmatpush1.bf16.msra.mxu0 0
  %226 = vmatprep.subr.bf16.mxu0 0
  %227 = vmatpush1.bf16.msra.mxu0 0
  %228 = vmatprep.mubr.bf16.mxu0 0
  %229 = vmatmul.mubr.bf16.gmra.mrb[0].mxu0 %v166
  %v230 = vpop.f32.mrb[0].mxu0
  %v231 = vadd.f32 %v52, %v230
  %v232 = vpop.f32.mrb[0].mxu0
  %v233 = vadd.f32 %v56, %v232
  %v234 = vpop.f32.mrb[0].mxu0
  %v235 = vadd.f32 %v52, %v234
  %v236 = vpop.f32.mrb[0].mxu0
  %v237 = vadd.f32 %v56, %v236
  %238 = vmatprep.mubr.bf16.mxu0 0
  %239 = vmatmul.mubr.bf16.gmra.mrb[0].mxu0 %v169
  %v240 = vpop.f32.mrb[0].mxu0
  %v241 = vadd.f32 %v52, %v240
  %v242 = vpop.f32.mrb[0].mxu0
  %v243 = vadd.f32 %v56, %v242
  %v244 = vpop.f32.mrb[0].mxu0
  %v245 = vadd.f32 %v52, %v244
  %v246 = vpop.f32.mrb[0].mxu0
  %v247 = vadd.f32 %v56, %v246
  %248 = vmatprep.mubr.bf16.mxu0 0
  %249 = vmatmul.mubr.bf16.gmra.mrb[0].mxu0 %v172
  %v250 = vpop.f32.mrb[0].mxu0
  %v251 = vadd.f32 %v52, %v250
  %v252 = vpop.f32.mrb[0].mxu0
  %v253 = vadd.f32 %v56, %v252
  %v254 = vpop.f32.mrb[0].mxu0
  %v255 = vadd.f32 %v52, %v254
  %v256 = vpop.f32.mrb[0].mxu0
  %v257 = vadd.f32 %v56, %v256
  %258 = vmatprep.mubr.bf16.mxu0 0
  %259 = vmatmul.mubr.bf16.gmra.mrb[0].mxu0 %v175
  %v260 = vpop.f32.mrb[0].mxu0
  %v261 = vadd.f32 %v52, %v260
  %v262 = vpop.f32.mrb[0].mxu0
  %v263 = vadd.f32 %v56, %v262
  %v264 = vpop.f32.mrb[0].mxu0
  %v265 = vadd.f32 %v52, %v264
  %v266 = vpop.f32.mrb[0].mxu0
  %v267 = vadd.f32 %v56, %v266
  %268 = vmatprep.mubr.bf16.mxu0 0
  %269 = vmatmul.mubr.bf16.gmra.mrb[0].mxu0 %v178
  %v270 = vpop.f32.mrb[0].mxu0
  %v271 = vadd.f32 %v52, %v270
  %v272 = vpop.f32.mrb[0].mxu0
  %v273 = vadd.f32 %v56, %v272
  %v274 = vpop.f32.mrb[0].mxu0
  %v275 = vadd.f32 %v52, %v274
  %v276 = vpop.f32.mrb[0].mxu0
  %v277 = vadd.f32 %v56, %v276
  %278 = vmatprep.mubr.bf16.mxu0 0
  %279 = vmatmul.mubr.bf16.gmra.mrb[0].mxu0 %v181
  %v280 = vpop.f32.mrb[0].mxu0
  %v281 = vadd.f32 %v52, %v280
  %v282 = vpop.f32.mrb[0].mxu0
  %v283 = vadd.f32 %v56, %v282
  %v284 = vpop.f32.mrb[0].mxu0
  %v285 = vadd.f32 %v52, %v284
  %v286 = vpop.f32.mrb[0].mxu0
  %v287 = vadd.f32 %v56, %v286
  %288 = vmatprep.mubr.bf16.mxu0 0
  %289 = vmatmul.mubr.bf16.gmra.mrb[0].mxu0 %v184
  %v290 = vpop.f32.mrb[0].mxu0
  %v291 = vadd.f32 %v52, %v290
  %v292 = vpop.f32.mrb[0].mxu0
  %v293 = vadd.f32 %v56, %v292
  %v294 = vpop.f32.mrb[0].mxu0
  %v295 = vadd.f32 %v52, %v294
  %v296 = vpop.f32.mrb[0].mxu0
  %v297 = vadd.f32 %v56, %v296
  %298 = vmatprep.mubr.bf16.mxu0 0
  %299 = vmatmul.mubr.bf16.gmra.mrb[0].mxu0 %v187
  %v300 = vpop.f32.mrb[0].mxu0
  %v301 = vadd.f32 %v52, %v300
  %v302 = vpop.f32.mrb[0].mxu0
  %v303 = vadd.f32 %v56, %v302
  %v304 = vpop.f32.mrb[0].mxu0
  %v305 = vadd.f32 %v52, %v304
  %v306 = vpop.f32.mrb[0].mxu0
  %v307 = vadd.f32 %v56, %v306
  %308 = vdwg.mxu0
  %v309 = vmax.f32 %v231, 0.0
  %v310 = vmax.f32 %v233, 0.0
  %v311 = vmax.f32 %v235, 0.0
  %v312 = vmax.f32 %v237, 0.0
  %v313 = vmax.f32 %v241, 0.0
  %v314 = vmax.f32 %v243, 0.0
  %v315 = vmax.f32 %v245, 0.0
  %v316 = vmax.f32 %v247, 0.0
  %v317 = vmax.f32 %v251, 0.0
  %v318 = vmax.f32 %v253, 0.0
  %v319 = vmax.f32 %v255, 0.0
  %v320 = vmax.f32 %v257, 0.0
  %v321 = vmax.f32 %v261, 0.0
  %v322 = vmax.f32 %v263, 0.0
  %v323 = vmax.f32 %v265, 0.0
  %v324 = vmax.f32 %v267, 0.0
  %v325 = vmax.f32 %v271, 0.0
  %v326 = vmax.f32 %v273, 0.0
  %v327 = vmax.f32 %v275, 0.0
  %v328 = vmax.f32 %v277, 0.0
  %v329 = vmax.f32 %v281, 0.0
  %v330 = vmax.f32 %v283, 0.0
  %v331 = vmax.f32 %v285, 0.0
  %v332 = vmax.f32 %v287, 0.0
  %v333 = vmax.f32 %v291, 0.0
  %v334 = vmax.f32 %v293, 0.0
  %v335 = vmax.f32 %v295, 0.0
  %v336 = vmax.f32 %v297, 0.0
  %v337 = vmax.f32 %v301, 0.0
  %v338 = vmax.f32 %v303, 0.0
  %v339 = vmax.f32 %v305, 0.0
  %v340 = vmax.f32 %v307, 0.0
  %v341 = vpack.c.bf16 %v311, %v309
  %v342 = vpack.c.bf16 %v312, %v310
  %v343 = vpack.c.bf16 %v315, %v313
  %v344 = vpack.c.bf16 %v316, %v314
  %v345 = vpack.c.bf16 %v319, %v317
  %v346 = vpack.c.bf16 %v320, %v318
  %v347 = vpack.c.bf16 %v323, %v321
  %v348 = vpack.c.bf16 %v324, %v322
  %v349 = vpack.c.bf16 %v327, %v325
  %v350 = vpack.c.bf16 %v328, %v326
  %v351 = vpack.c.bf16 %v331, %v329
  %v352 = vpack.c.bf16 %v332, %v330
  %v353 = vpack.c.bf16 %v335, %v333
  %v354 = vpack.c.bf16 %v336, %v334
  %v355 = vpack.c.bf16 %v339, %v337
  %v356 = vpack.c.bf16 %v340, %v338
  %v357 = vld [vmem:[%s2] sm:$0xf]
  %v358 = vld [vmem:[%s2 + $0x4] sm:$0xf]
  %v359 = vld [vmem:[%s2 + $0x8] sm:$0xf]
  %v360 = vld [vmem:[%s2 + $0xc] sm:$0xf]
  %v361 = vld [vmem:[%s2 + $0x10] sm:$0xf]
  %v362 = vld [vmem:[%s2 + $0x14] sm:$0xf]
  %v363 = vld [vmem:[%s2 + $0x18] sm:$0xf]
  %v364 = vld [vmem:[%s2 + $0x1c] sm:$0xf]
  %v365 = vld [vmem:[%s2 + $0x20] sm:$0xf]
  %v366 = vld [vmem:[%s2 + $0x24] sm:$0xf]
  %v367 = vld [vmem:[%s2 + $0x28] sm:$0xf]
  %v368 = vld [vmem:[%s2 + $0x2c] sm:$0xf]
  %v369 = vld [vmem:[%s2 + $0x30] sm:$0xf]
  %v370 = vld [vmem:[%s2 + $0x34] sm:$0xf]
  %v371 = vld [vmem:[%s2 + $0x38] sm:$0xf]
  %v372 = vld [vmem:[%s2 + $0x3c] sm:$0xf]
  %v373 = vld [vmem:[%s2 + $0x40] sm:$0xf]
  %v374 = vld [vmem:[%s2 + $0x44] sm:$0xf]
  %v375 = vld [vmem:[%s2 + $0x48] sm:$0x7]
  %v376 = vld [vmem:[%s3 + $0x1] ss:$0 sm:$0xff]
  %v396 = vunpack.c.l.b16 %v357
  %v397 = vunpack.c.l.b16 %v358
  %v398 = vunpack.c.l.b16 %v359
  %v399 = vunpack.c.l.b16 %v360
  %v400 = vunpack.c.l.b16 %v361
  %v401 = vunpack.c.l.b16 %v362
  %v402 = vunpack.c.l.b16 %v363
  %v403 = vunpack.c.l.b16 %v364
  %v404 = vunpack.c.l.b16 %v365
  %v405 = vunpack.c.l.b16 %v366
  %v406 = vunpack.c.l.b16 %v367
  %v407 = vunpack.c.l.b16 %v368
  %v408 = vunpack.c.l.b16 %v369
  %v409 = vunpack.c.l.b16 %v370
  %v410 = vunpack.c.l.b16 %v371
  %v411 = vunpack.c.l.b16 %v372
  %v412 = vunpack.c.l.b16 %v373
  %v413 = vunpack.c.l.b16 %v374
  %v414 = vunpack.c.l.b16 %v375
  %v415 = vpack.c.b16 %v397, %v396
  %v416 = vpack.c.b16 %v399, %v398
  %v417 = vpack.c.b16 %v401, %v400
  %v418 = vpack.c.b16 %v403, %v402
  %v419 = vpack.c.b16 %v405, %v404
  %v420 = vpack.c.b16 %v407, %v406
  %v421 = vpack.c.b16 %v409, %v408
  %v422 = vpack.c.b16 %v411, %v410
  %v423 = vpack.c.b16 %v413, %v412
  %v424 = vpack.c.b16 %v414, %v414
  %vm434 = vcmask 179200
  %v436 = vsel %vm434, %v342, 0
  %v439 = vsel %vm434, %v344, 0
  %v442 = vsel %vm434, %v346, 0
  %v445 = vsel %vm434, %v348, 0
  %v448 = vsel %vm434, %v350, 0
  %v451 = vsel %vm434, %v352, 0
  %v454 = vsel %vm434, %v354, 0
  %v457 = vsel %vm434, %v356, 0
  %vm459 = vcmask 1042432
  %v461 = vsel %vm459, %v424, 0
  %463 = vmatprep.subr.bf16.mxu0 0
  %464 = vmatpush1.bf16.msra.mxu0 %v415
  %465 = vmatprep.subr.bf16.mxu0 0
  %466 = vmatpush1.bf16.msra.mxu0 %v416
  %467 = vmatprep.subr.bf16.mxu0 0
  %468 = vmatpush1.bf16.msra.mxu0 %v417
  %469 = vmatprep.subr.bf16.mxu0 0
  %470 = vmatpush1.bf16.msra.mxu0 %v418
  %471 = vmatprep.subr.bf16.mxu0 0
  %472 = vmatpush1.bf16.msra.mxu0 %v419
  %473 = vmatprep.subr.bf16.mxu0 0
  %474 = vmatpush1.bf16.msra.mxu0 %v420
  %475 = vmatprep.subr.bf16.mxu0 0
  %476 = vmatpush1.bf16.msra.mxu0 %v421
  %477 = vmatprep.subr.bf16.mxu0 0
  %478 = vmatpush1.bf16.msra.mxu0 %v422
  %479 = vmatprep.subr.bf16.mxu0 0
  %480 = vmatpush1.bf16.msra.mxu0 %v423
  %481 = vmatprep.subr.bf16.mxu0 0
  %482 = vmatpush1.bf16.msra.mxu0 %v461
  %483 = vmatprep.subr.bf16.mxu0 0
  %484 = vmatpush1.bf16.msra.mxu0 0
  %485 = vmatprep.subr.bf16.mxu0 0
  %486 = vmatpush1.bf16.msra.mxu0 0
  %487 = vmatprep.subr.bf16.mxu0 0
  %488 = vmatpush1.bf16.msra.mxu0 0
  %489 = vmatprep.subr.bf16.mxu0 0
  %490 = vmatpush1.bf16.msra.mxu0 0
  %491 = vmatprep.subr.bf16.mxu0 0
  %492 = vmatpush1.bf16.msra.mxu0 0
  %493 = vmatprep.subr.bf16.mxu0 0
  %494 = vmatpush1.bf16.msra.mxu0 0
  %495 = vmatprep.mubr.bf16.mxu0 %v436
  %496 = vmatmul.mubr.bf16.gmra.mrb[0].mxu0 %v341
  %v497 = vpop.f32.mrb[0].mxu0
  %v498 = vadd.f32 %v376, %v497
  %v499 = vpop.f32.mrb[0].mxu0
  %v500 = vpop.f32.mrb[0].mxu0
  %v501 = vadd.f32 %v376, %v500
  %v502 = vpop.f32.mrb[0].mxu0
  %503 = vmatprep.mubr.bf16.mxu0 %v439
  %504 = vmatmul.mubr.bf16.gmra.mrb[0].mxu0 %v343
  %v505 = vpop.f32.mrb[0].mxu0
  %v506 = vadd.f32 %v376, %v505
  %v507 = vpop.f32.mrb[0].mxu0
  %v508 = vpop.f32.mrb[0].mxu0
  %v509 = vadd.f32 %v376, %v508
  %v510 = vpop.f32.mrb[0].mxu0
  %511 = vmatprep.mubr.bf16.mxu0 %v442
  %512 = vmatmul.mubr.bf16.gmra.mrb[0].mxu0 %v345
  %v513 = vpop.f32.mrb[0].mxu0
  %v514 = vadd.f32 %v376, %v513
  %v515 = vpop.f32.mrb[0].mxu0
  %v516 = vpop.f32.mrb[0].mxu0
  %v517 = vadd.f32 %v376, %v516
  %v518 = vpop.f32.mrb[0].mxu0
  %519 = vmatprep.mubr.bf16.mxu0 %v445
  %520 = vmatmul.mubr.bf16.gmra.mrb[0].mxu0 %v347
  %v521 = vpop.f32.mrb[0].mxu0
  %v522 = vadd.f32 %v376, %v521
  %v523 = vpop.f32.mrb[0].mxu0
  %v524 = vpop.f32.mrb[0].mxu0
  %v525 = vadd.f32 %v376, %v524
  %v526 = vpop.f32.mrb[0].mxu0
  %527 = vmatprep.mubr.bf16.mxu0 %v448
  %528 = vmatmul.mubr.bf16.gmra.mrb[0].mxu0 %v349
  %v529 = vpop.f32.mrb[0].mxu0
  %v530 = vadd.f32 %v376, %v529
  %v531 = vpop.f32.mrb[0].mxu0
  %v532 = vpop.f32.mrb[0].mxu0
  %v533 = vadd.f32 %v376, %v532
  %v534 = vpop.f32.mrb[0].mxu0
  %535 = vmatprep.mubr.bf16.mxu0 %v451
  %536 = vmatmul.mubr.bf16.gmra.mrb[0].mxu0 %v351
  %v537 = vpop.f32.mrb[0].mxu0
  %v538 = vadd.f32 %v376, %v537
  %v539 = vpop.f32.mrb[0].mxu0
  %v540 = vpop.f32.mrb[0].mxu0
  %v541 = vadd.f32 %v376, %v540
  %v542 = vpop.f32.mrb[0].mxu0
  %543 = vmatprep.mubr.bf16.mxu0 %v454
  %544 = vmatmul.mubr.bf16.gmra.mrb[0].mxu0 %v353
  %v545 = vpop.f32.mrb[0].mxu0
  %v546 = vadd.f32 %v376, %v545
  %v547 = vpop.f32.mrb[0].mxu0
  %v548 = vpop.f32.mrb[0].mxu0
  %v549 = vadd.f32 %v376, %v548
  %v550 = vpop.f32.mrb[0].mxu0
  %551 = vmatprep.mubr.bf16.mxu0 %v457
  %552 = vmatmul.mubr.bf16.gmra.mrb[0].mxu0 %v355
  %v553 = vpop.f32.mrb[0].mxu0
  %v554 = vadd.f32 %v376, %v553
  %v555 = vpop.f32.mrb[0].mxu0
  %v556 = vpop.f32.mrb[0].mxu0
  %v557 = vadd.f32 %v376, %v556
  %v558 = vpop.f32.mrb[0].mxu0
  %559 = vdwg.mxu0
  %v560 = vmax.f32 %v498, 0.0
  %v561 = vmax.f32 %v501, 0.0
  %v562 = vmax.f32 %v506, 0.0
  %v563 = vmax.f32 %v509, 0.0
  %v564 = vmax.f32 %v514, 0.0
  %v565 = vmax.f32 %v517, 0.0
  %v566 = vmax.f32 %v522, 0.0
  %v567 = vmax.f32 %v525, 0.0
  %v568 = vmax.f32 %v530, 0.0
  %v569 = vmax.f32 %v533, 0.0
  %v570 = vmax.f32 %v538, 0.0
  %v571 = vmax.f32 %v541, 0.0
  %v572 = vmax.f32 %v546, 0.0
  %v573 = vmax.f32 %v549, 0.0
  %v574 = vmax.f32 %v554, 0.0
  %v575 = vmax.f32 %v557, 0.0
  %v576 = vld [vmem:[%s3 + $0x2] ss:$0 sm:$0xff]
  %v577 = vmul.f32 %v560, %v576
  %v578 = vmul.f32 %v561, %v576
  %v579 = vmul.f32 %v562, %v576
  %v580 = vmul.f32 %v563, %v576
  %v581 = vmul.f32 %v564, %v576
  %v582 = vmul.f32 %v565, %v576
  %v583 = vmul.f32 %v566, %v576
  %v584 = vmul.f32 %v567, %v576
  %v585 = vmul.f32 %v568, %v576
  %v586 = vmul.f32 %v569, %v576
  %v587 = vmul.f32 %v570, %v576
  %v588 = vmul.f32 %v571, %v576
  %v589 = vmul.f32 %v572, %v576
  %v590 = vmul.f32 %v573, %v576
  %v591 = vmul.f32 %v574, %v576
  %v592 = vmul.f32 %v575, %v576
  %vm593 = vcmask 523264
  %v594 = vsel %vm593, %v577, 0.0
  %595 = vadd.xlane.f32.xlu0 %v594
  %v596 = vpop.xlane.xlu0 %595
  %v597 = vsel %vm593, %v578, 0.0
  %598 = vadd.xlane.f32.xlu0 %v597
  %v599 = vpop.xlane.xlu0 %598
  %v600 = vsel %vm593, %v579, 0.0
  %601 = vadd.xlane.f32.xlu0 %v600
  %v602 = vpop.xlane.xlu0 %601
  %v603 = vsel %vm593, %v580, 0.0
  %604 = vadd.xlane.f32.xlu0 %v603
  %v605 = vpop.xlane.xlu0 %604
  %v606 = vsel %vm593, %v581, 0.0
  %607 = vadd.xlane.f32.xlu0 %v606
  %v608 = vpop.xlane.xlu0 %607
  %v609 = vsel %vm593, %v582, 0.0
  %610 = vadd.xlane.f32.xlu0 %v609
  %v611 = vpop.xlane.xlu0 %610
  %v612 = vsel %vm593, %v583, 0.0
  %613 = vadd.xlane.f32.xlu0 %v612
  %v614 = vpop.xlane.xlu0 %613
  %v615 = vsel %vm593, %v584, 0.0
  %616 = vadd.xlane.f32.xlu0 %v615
  %v617 = vpop.xlane.xlu0 %616
  %v618 = vsel %vm593, %v585, 0.0
  %619 = vadd.xlane.f32.xlu0 %v618
  %v620 = vpop.xlane.xlu0 %619
  %v621 = vsel %vm593, %v586, 0.0
  %622 = vadd.xlane.f32.xlu0 %v621
  %v623 = vpop.xlane.xlu0 %622
  %v624 = vsel %vm593, %v587, 0.0
  %625 = vadd.xlane.f32.xlu0 %v624
  %v626 = vpop.xlane.xlu0 %625
  %v627 = vsel %vm593, %v588, 0.0
  %628 = vadd.xlane.f32.xlu0 %v627
  %v629 = vpop.xlane.xlu0 %628
  %v630 = vsel %vm593, %v589, 0.0
  %631 = vadd.xlane.f32.xlu0 %v630
  %v632 = vpop.xlane.xlu0 %631
  %v633 = vsel %vm593, %v590, 0.0
  %634 = vadd.xlane.f32.xlu0 %v633
  %v635 = vpop.xlane.xlu0 %634
  %v636 = vsel %vm593, %v591, 0.0
  %637 = vadd.xlane.f32.xlu0 %v636
  %v638 = vpop.xlane.xlu0 %637
  %v639 = vsel %vm593, %v592, 0.0
  %640 = vadd.xlane.f32.xlu0 %v639
  %v641 = vpop.xlane.xlu0 %640
  %v642 = vld [vmem:[%s3 + $0x3] ss:$0 sm:$0xff]
  %v643 = vadd.f32 %v596, %v642
  %v644 = vadd.f32 %v599, %v642
  %v645 = vadd.f32 %v602, %v642
  %v646 = vadd.f32 %v605, %v642
  %v647 = vadd.f32 %v608, %v642
  %v648 = vadd.f32 %v611, %v642
  %v649 = vadd.f32 %v614, %v642
  %v650 = vadd.f32 %v617, %v642
  %v651 = vadd.f32 %v620, %v642
  %v652 = vadd.f32 %v623, %v642
  %v653 = vadd.f32 %v626, %v642
  %v654 = vadd.f32 %v629, %v642
  %v655 = vadd.f32 %v632, %v642
  %v656 = vadd.f32 %v635, %v642
  %v657 = vadd.f32 %v638, %v642
  %v658 = vadd.f32 %v641, %v642
  %vm659 = vcmask 7168
  %660 = vst.msk [vmem:[%s4] sm:$0xff] %vm659, %v643
  %661 = vst.msk [vmem:[%s4 + $0x8] sm:$0xff] %vm659, %v644
  %662 = vst.msk [vmem:[%s4 + $0x10] sm:$0xff] %vm659, %v645
  %663 = vst.msk [vmem:[%s4 + $0x18] sm:$0xff] %vm659, %v646
  %664 = vst.msk [vmem:[%s4 + $0x20] sm:$0xff] %vm659, %v647
  %665 = vst.msk [vmem:[%s4 + $0x28] sm:$0xff] %vm659, %v648
  %666 = vst.msk [vmem:[%s4 + $0x30] sm:$0xff] %vm659, %v649
  %667 = vst.msk [vmem:[%s4 + $0x38] sm:$0xff] %vm659, %v650
  %668 = vst.msk [vmem:[%s4 + $0x40] sm:$0xff] %vm659, %v651
  %669 = vst.msk [vmem:[%s4 + $0x48] sm:$0xff] %vm659, %v652
  %670 = vst.msk [vmem:[%s4 + $0x50] sm:$0xff] %vm659, %v653
  %671 = vst.msk [vmem:[%s4 + $0x58] sm:$0xff] %vm659, %v654
  %672 = vst.msk [vmem:[%s4 + $0x60] sm:$0xff] %vm659, %v655
  %673 = vst.msk [vmem:[%s4 + $0x68] sm:$0xff] %vm659, %v656
  %674 = vst.msk [vmem:[%s4 + $0x70] sm:$0xff] %vm659, %v657
  %675 = vst.msk [vmem:[%s4 + $0x78] sm:$0xff] %vm659, %v658
  // Predicated region
  $region18: #{tpu_custom_call.1} parent=0 // pred_check
    _
  $region19: #{tpu_custom_call.1} parent=0 // pred_check_branch
    %677 = sbr.rel (0) target = $region21
  $region20: #{tpu_custom_call.1} parent=0 // pred_region
    _
  $region21: #{tpu_custom_call.1} parent=0 // pred_fallthru
    _
  // Predicated region
  $region22: #{tpu_custom_call.1} parent=0 // pred_check
    _
  $region23: #{tpu_custom_call.1} parent=0 // pred_check_branch
    %679 = sbr.rel (0) target = $region25
  $region24: #{tpu_custom_call.1} parent=0 // pred_region
    _
  $region25: #{tpu_custom_call.1} parent=0 // pred_fallthru
    _

</llo_original>
